<compile_context>
chip_gen: v7x
topology: tpu7x:2x2x1
jax: 0.10.0
libtpu: 0.0.40
codegen_flags: <defaults>
</compile_context>

<pallas_src>
import functools

import jax
import jax.numpy as jnp
from jax.experimental import pallas as pl
from jax.experimental.pallas import tpu as pltpu


def _round_up(x, m):
    return ((x + m - 1) // m) * m


def _cdiv(a, b):
    return (a + b - 1) // b


def _vmem_capacity_bytes():
    """Per-generation VMEM capacity (128 MiB on v5e/v6e, 64 MiB per TC on v7x)."""
    try:
        cap = int(getattr(pltpu.get_tpu_info(), "vmem_capacity_bytes", 0))
        if cap > 0:
            return cap
    except Exception:
        pass
    return 64 << 20  # conservative fallback (safe on every generation)


# ------------------------------- Pallas kernel ------------------------------- #
def _pixel_shuffle_proj_kernel(x_ref, w_ref, o_ref):
    """Fused pixel_shuffle + bias-free projection for one (M, N) tile.

    x_ref: (tbh, r, w_out, r*E)  activation tile in its ORIGINAL (un-shuffled) layout
    w_ref: (r,   r*E, tn)        pre-transposed / lane-padded weight column block (bf16)
    o_ref: (tbh, w_out, tn)      bf16 output tile
    """
    tbh, r, w_out, kc = x_ref.shape
    rows = tbh * w_out
    acc = None
    # r is 2..4: unrolled reduction over the pixel-shuffle row-chunks.  Each chunk is a
    # contiguous slab of both the activation and the prepared weight, so the shuffle
    # itself costs zero extra HBM traffic; MXU accumulates in f32.
    for r1 in range(r):
        xr = x_ref[:, r1, :, :].reshape(rows, kc).astype(jnp.bfloat16)
        wr = w_ref[r1, :, :]
        part = jnp.dot(xr, wr, preferred_element_type=jnp.float32)
        acc = part if acc is None else acc + part
    o_ref[...] = acc.reshape(o_ref.shape).astype(o_ref.dtype)


# ------------------------------- kernel wrapper ------------------------------ #
def pallas_pixel_shuffle_proj(x5, w4, *, rows_target=256):
    """x5: (B*h_out, r, w_out, r*E) activations (any float dtype; cast to bf16 in-kernel)
       w4: (r, r*E, N_pad) bf16 with N_pad % 128 == 0.
       Returns (B*h_out, w_out, N_pad) bf16."""
    BH, r, w_out, kc = x5.shape
    r2, kc2, n_pad = w4.shape
    assert (r, kc) == (r2, kc2) and n_pad % 128 == 0

    cap = _vmem_capacity_bytes()
    budget = int(cap * 0.55)  # budget for our (double-buffered) tiles
    x_item = x5.dtype.itemsize

    def footprint(tbh_, tn_):
        x_blk = tbh_ * r * w_out * kc * x_item
        w_blk = r * kc * tn_ * 2
        o_blk = tbh_ * w_out * tn_ * 2
        return 2 * (x_blk + w_blk + o_blk)  # Pallas double-buffers every operand

    # MXU-shaped M tile (~rows_target rows) and, ideally, the whole weight resident
    # (tn = N_pad -> W is fetched from HBM exactly once).  Shrink tiles, not the limit.
    tbh = max(1, min(BH, max(1, rows_target // max(w_out, 1))))
    tn = n_pad
    while footprint(tbh, tn) > budget and tbh * w_out > 64:
        tbh = max(1, tbh // 2)
    while footprint(tbh, tn) > budget and tn > 128:
        tn = max(128, ((tn // 2) // 128) * 128)
    while footprint(tbh, tn) > budget and tbh > 1:
        tbh = max(1, tbh // 2)
    # TODO(synk): for pathological D_in where even (tbh=1, tn=128) overflows the budget,
    # add a K grid axis with an f32 VMEM scratch accumulator.

    m_tiles = _cdiv(BH, tbh)
    n_tiles = _cdiv(n_pad, tn)

    # Megacore (v7x has 2 TensorCores): ensure a parallel axis has >= 2 blocks.
    if m_tiles * n_tiles < 2:
        if BH >= 2:
            tbh = _cdiv(BH, 2)
            m_tiles = _cdiv(BH, tbh)
        elif n_pad >= 256:
            tn = max(128, ((n_pad // 2) // 128) * 128)
            n_tiles = _cdiv(n_pad, tn)

    # Grid ordering by estimated HBM traffic: the operand indexed only by the INNER
    # grid axis gets re-fetched once per outer step, so keep the cheaper re-stream inner.
    x_total = BH * r * w_out * kc * x_item
    w_total = r * kc * n_pad * 2
    cost_m_outer = x_total + m_tiles * w_total   # X once, W re-streamed per M tile
    cost_n_outer = w_total + n_tiles * x_total   # W once, X re-streamed per N tile
    if cost_n_outer <= cost_m_outer:
        grid = (n_tiles, m_tiles)
        x_map = lambda j, i: (i, 0, 0, 0)
        w_map = lambda j, i: (0, 0, j)
        o_map = lambda j, i: (i, 0, j)
    else:
        grid = (m_tiles, n_tiles)
        x_map = lambda i, j: (i, 0, 0, 0)
        w_map = lambda i, j: (0, 0, j)
        o_map = lambda i, j: (i, 0, j)

    fp = footprint(tbh, tn)
    vmem_limit = int(min(cap * 0.92, max(cap * 0.8, fp + (8 << 20))))

    return pl.pallas_call(
        _pixel_shuffle_proj_kernel,
        out_shape=jax.ShapeDtypeStruct((BH, w_out, n_pad), jnp.bfloat16),
        grid_spec=pltpu.PrefetchScalarGridSpec(
            num_scalar_prefetch=0,
            grid=grid,
            in_specs=[
                pl.BlockSpec((tbh, r, w_out, kc), x_map),
                pl.BlockSpec((r, kc, tn), w_map),
            ],
            out_specs=pl.BlockSpec((tbh, w_out, tn), o_map),
        ),
        compiler_params=pltpu.CompilerParams(
            dimension_semantics=("parallel", "parallel"),
            vmem_limit_bytes=vmem_limit,
        ),
    )(x5, w4)


# ------------------------------ module equivalent ---------------------------- #
def prepare_proj_weight(proj_weight, scale_factor):
    """One-time weight prep (do at init, NOT per forward call).

    torch nn.Linear weight (D_out, D_in) -> (r, r*E, round_up(D_out, 128)) bf16:
    transposed, split into the r pixel-shuffle chunks and lane-padded so the kernel's
    output stays lane-dense."""
    d_out, d_in = proj_weight.shape
    r = scale_factor
    assert d_in % (r * r) == 0
    kc = d_in // r                      # = r * E
    n_pad = _round_up(d_out, 128)
    w_t = jnp.transpose(proj_weight)    # (D_in, D_out)
    if n_pad != d_out:
        w_t = jnp.pad(w_t, ((0, 0), (0, n_pad - d_out)))
    return w_t.reshape(r, kc, n_pad).astype(jnp.bfloat16), d_out


def pixel_shuffle_ref(x, scale_factor):
    """Pure-JAX reference matching ModalityProjector.pixel_shuffle (for checking only)."""
    bsz, seq, embed_dim = x.shape
    seq_root = int(round(seq ** 0.5))
    assert seq_root * seq_root == seq and seq_root % scale_factor == 0
    h_out = w_out = seq_root // scale_factor
    x = x.reshape(bsz, h_out, scale_factor, w_out, scale_factor, embed_dim)
    x = jnp.transpose(x, (0, 1, 3, 2, 4, 5))
    return x.reshape(bsz, h_out * w_out, embed_dim * scale_factor ** 2)


@functools.partial(jax.jit, static_argnames=("scale_factor", "d_out"))
def modality_projector_forward(x, w_prepared, scale_factor, d_out):
    """
    x: (B, S, vit_hidden_dim)  (bf16 preferred; f32 accepted and cast in-kernel)
    w_prepared: (r, r*E, N_pad) bf16 from prepare_proj_weight
    returns: (B, S // scale_factor^2, d_out) bf16
    """
    B, S, E = x.shape
    r = scale_factor
    seq_root = int(round(S ** 0.5))
    assert seq_root * seq_root == S and seq_root % r == 0
    h_out = w_out = seq_root // r
    # Copy-free reshape; the permute half of pixel_shuffle is fused into the kernel's
    # block indexing, so no shuffled activation round-trips through HBM.
    x5 = x.reshape(B * h_out, r, w_out, r * E)
    out = pallas_pixel_shuffle_proj(x5, w_prepared)      # (B*h_out, w_out, N_pad) bf16
    n_pad = out.shape[-1]
    out = out.reshape(B, h_out * w_out, n_pad)
    if n_pad != d_out:  # only when lm_hidden_dim isn't a multiple of 128
        out = out[:, :, :d_out]
    return out


# ----------------------------------- main ------------------------------------ #
if __name__ == "__main__":
    # Small synthetic config consistent with the module:
    vit_hidden_dim = 32
    mp_pixel_shuffle_factor = 2
    lm_hidden_dim = 64
    input_dim = vit_hidden_dim * mp_pixel_shuffle_factor ** 2   # 128

    batch = 2
    seq = 64  # 8x8 spatial grid, divisible by scale_factor

    key = jax.random.PRNGKey(0)
    kx, kw = jax.random.split(key)
    x = jax.random.normal(kx, (batch, seq, vit_hidden_dim), dtype=jnp.float32)
    # nn.init.normal_(weight, mean=0.0, std=0.02); torch Linear weight shape (out, in).
    proj_weight = 0.02 * jax.random.normal(
        kw, (lm_hidden_dim, input_dim), dtype=jnp.float32
    )

    # One-time weight prep (equivalent to doing it at module init).
    w_prepared, d_out = prepare_proj_weight(proj_weight, mp_pixel_shuffle_factor)

    out = modality_projector_forward(x, w_prepared, mp_pixel_shuffle_factor, d_out)
    out = jax.block_until_ready(out)

    # Pure-JAX f32 reference (kernel uses bf16 operands/output -> loose tolerance).
    ref = pixel_shuffle_ref(x, mp_pixel_shuffle_factor) @ proj_weight.T
    assert out.shape == (batch, seq // mp_pixel_shuffle_factor ** 2, lm_hidden_dim)
    err = float(jnp.max(jnp.abs(out.astype(jnp.float32) - ref)))
    assert err < 2e-2, err

    print("KERNEL_OK")
</pallas_src>

<mosaic_0001>
module attributes {stable_mosaic.version = 11 : i64} {
  func.func @_pixel_shuffle_proj_kernel(%arg0: i32, %arg1: i32, %arg2: memref<4x2x4x64xf32, #tpu.memory_space<vmem>>, %arg3: memref<2x64x128xbf16, #tpu.memory_space<vmem>>, %arg4: memref<4x4x128xbf16, #tpu.memory_space<vmem>>) attributes {dimension_semantics = [#tpu.dimension_semantics<parallel>, #tpu.dimension_semantics<parallel>], iteration_bounds = array<i64: 1, 2>, scalar_prefetch = 0 : i64, scratch_operands = 0 : i64, tpu.core_type = #tpu.core_type<tc>, window_params = [{transform_indices = @transform_0, window_bounds = array<i64: 4, 2, 4, 64>}, {transform_indices = @transform_1, window_bounds = array<i64: 2, 64, 128>}, {transform_indices = @transform_2, window_bounds = array<i64: 4, 4, 128>}]} {
    %c0 = arith.constant 0 : index
    %c0_0 = arith.constant 0 : index
    %c0_1 = arith.constant 0 : index
    %c0_2 = arith.constant 0 : index
    %0 = vector.load %arg2[%c0, %c0_0, %c0_1, %c0_2] : memref<4x2x4x64xf32, #tpu.memory_space<vmem>>, vector<4x1x4x64xf32>
    %1 = vector.shape_cast %0 : vector<4x1x4x64xf32> to vector<4x4x64xf32>
    %2 = vector.shape_cast %1 : vector<4x4x64xf32> to vector<16x64xf32>
    %3 = arith.truncf %2 : vector<16x64xf32> to vector<16x64xbf16>
    %c0_3 = arith.constant 0 : index
    %c0_4 = arith.constant 0 : index
    %c0_5 = arith.constant 0 : index
    %4 = vector.load %arg3[%c0_3, %c0_4, %c0_5] : memref<2x64x128xbf16, #tpu.memory_space<vmem>>, vector<1x64x128xbf16>
    %5 = vector.shape_cast %4 : vector<1x64x128xbf16> to vector<64x128xbf16>
    %cst = arith.constant dense<0.000000e+00> : vector<16x128xf32>
    %6 = tpu.matmul %3, %5, %cst {dimension_numbers = #tpu.dot_dimension_numbers<[1], [0], [0], [1], [0, 0, 1, 1], [], []>} : vector<16x64xbf16>, vector<64x128xbf16>, vector<16x128xf32> -> vector<16x128xf32>
    %c0_6 = arith.constant 0 : index
    %c1 = arith.constant 1 : index
    %c0_7 = arith.constant 0 : index
    %c0_8 = arith.constant 0 : index
    %7 = vector.load %arg2[%c0_6, %c1, %c0_7, %c0_8] : memref<4x2x4x64xf32, #tpu.memory_space<vmem>>, vector<4x1x4x64xf32>
    %8 = vector.shape_cast %7 : vector<4x1x4x64xf32> to vector<4x4x64xf32>
    %9 = vector.shape_cast %8 : vector<4x4x64xf32> to vector<16x64xf32>
    %10 = arith.truncf %9 : vector<16x64xf32> to vector<16x64xbf16>
    %c1_9 = arith.constant 1 : index
    %c0_10 = arith.constant 0 : index
    %c0_11 = arith.constant 0 : index
    %11 = vector.load %arg3[%c1_9, %c0_10, %c0_11] : memref<2x64x128xbf16, #tpu.memory_space<vmem>>, vector<1x64x128xbf16>
    %12 = vector.shape_cast %11 : vector<1x64x128xbf16> to vector<64x128xbf16>
    %cst_12 = arith.constant dense<0.000000e+00> : vector<16x128xf32>
    %13 = tpu.matmul %10, %12, %cst_12 {dimension_numbers = #tpu.dot_dimension_numbers<[1], [0], [0], [1], [0, 0, 1, 1], [], []>} : vector<16x64xbf16>, vector<64x128xbf16>, vector<16x128xf32> -> vector<16x128xf32>
    %14 = arith.addf %6, %13 : vector<16x128xf32>
    %15 = vector.shape_cast %14 : vector<16x128xf32> to vector<4x4x128xf32>
    %16 = arith.truncf %15 : vector<4x4x128xf32> to vector<4x4x128xbf16>
    %c0_13 = arith.constant 0 : index
    %c0_14 = arith.constant 0 : index
    %c0_15 = arith.constant 0 : index
    %17 = vector.load %arg4[%c0_13, %c0_14, %c0_15] : memref<4x4x128xbf16, #tpu.memory_space<vmem>>, vector<4x4x128xbf16>
    tpu.vector_store %arg4[%c0_13, %c0_14, %c0_15], %16 {strides = array<i32>} : memref<4x4x128xbf16, #tpu.memory_space<vmem>>, vector<4x4x128xbf16>,
    return
  }
  func.func @transform_0(%arg0: i32, %arg1: i32) -> (i32, i32, i32, i32) {
    %c0_i32 = arith.constant 0 : i32
    %c0_i32_0 = arith.constant 0 : i32
    %c0_i32_1 = arith.constant 0 : i32
    %c0_i32_2 = arith.constant 0 : i32
    return %arg1, %c0_i32, %c0_i32_0, %c0_i32_1 : i32, i32, i32, i32
  }
  func.func @transform_1(%arg0: i32, %arg1: i32) -> (i32, i32, i32) {
    %c0_i32 = arith.constant 0 : i32
    %c0_i32_0 = arith.constant 0 : i32
    %c0_i32_1 = arith.constant 0 : i32
    return %c0_i32, %c0_i32_0, %arg0 : i32, i32, i32
  }
  func.func @transform_2(%arg0: i32, %arg1: i32) -> (i32, i32, i32) {
    %c0_i32 = arith.constant 0 : i32
    %c0_i32_0 = arith.constant 0 : i32
    return %arg1, %c0_i32, %arg0 : i32, i32, i32
  }
}

</mosaic_0001>

<llo_original>
// kernel: modality_projector_forward.1
$region0: #{modality_projector_forward.1}
  #allocation0 [shape = 'u32[]', space=smem, size = 0x4, offset = 0x4, fixed_abs, tag = 'smem constant byte address 0x4 - core index']
  #allocation1 [shape = 'u32[144,128]{1,0:T(1,128)}', space=vmem, size = 0x12000, scoped, tag = 'internal scratch']
  %s0 = inlined_call_operand.vmem [shape: f32[8,2,4,64], index: 0, kind: input, shape index: {}]
  %s1 = inlined_call_operand.vmem [shape: bf16[2,64,128], index: 1, kind: input, shape index: {}]
  %s2 = inlined_call_operand.hbm [shape: bf16[8,4,128], index: 2, kind: output, shape index: {}]
  %s3 = sld [smem:[#allocation0]]
  $region41: #{modality_projector_forward.1} parent=0
    _
  %s5 = ssub.s32 1, %s3
  %s6 = scalar_select 0, %s5, %s3
  $region1: #{modality_projector_forward.1} parent=0
    #allocation2 [shape = 'u8[8192]{0}', space=vmem, size = 0x2000, scoped, tag = 'output window, operand 0']
    #allocation3 [shape = 's32[2]{0}', space=sflag, size = 0x8, scoped, tag = 'scoped memory for modality_projector_forward.1']
    %7 = vsyncpa [#allocation3], 0
    %s8 = scalar_lea.sflag [#allocation3], 1
    %9 = vsyncpa %s8, 0
    loop: start=0, step=1, limit=4
    $region2: #{modality_projector_forward.1} parent=1 // loop_pre_header
      _
    $region3: #{modality_projector_forward.1} parent=1 // loop_header
      %s11 = sphi 0, %s15
      %p12 = scmp.ge.s32.totalorder %s11, 4
      %s18 = sphi 0, %s30
      %s19 = sphi 0, %s26
      %s20 = sphi 0, %s18
      %s21 = sphi 0, %s19
      %s22 = sphi 0, %s20
      %s23 = sphi 0, %s21
      %s33 = sphi 0, %s35
      %s36 = sphi 0, %s33
      %s37 = sphi 0, %s36
      %s53 = sphi 0, %s37
      %s59 = sphi 0, %s61
      %s62 = sphi 0, %s59
      %s63 = sphi 0, %s62
      %s79 = sphi 0, %s63
      %s87 = sphi 0, %s89
      %s90 = sphi 0, %s87
      %s91 = sphi 0, %s90
      %s107 = sphi 0, %s91
    $region4: #{modality_projector_forward.1} parent=1 // loop_header_branch
      %14 = sbr.rel (%p12) target = $region8
    $region5: #{modality_projector_forward.1} parent=1 // loop_body
      %s16 = ssub.s32 %s11, 1
      %s17 = ssub.s32 %s11, 2
      %s24 = sadd.s32 1, %s19
      %p25 = scmp.ge.s32.totalorder %s24, 2
      %s26 = scalar_select %p25, 0, %s24
      %s27 = sadd.s32 1, %s18
      %s28 = scalar_select %p25, %s27, %s18
      %p29 = scmp.ge.s32.totalorder %s28, 1
      %s30 = scalar_select %p29, 0, %s28
      %s31 = ssub.s32 %s19, %s26
      %p32 = scmp.eq.s32.totalorder %s31, 0
      %s34 = sadd.s32 %s33, 1
      %s35 = scalar_select %p32, %s33, %s34
      %p38 = pneg %p32
      %p39 = scmp.eq.s32.totalorder %s11, 1
      %p40 = por %p38, %p39
      %p41 = scmp.ne.s32.totalorder %s33, %s36
      %p42 = scmp.eq.s32.totalorder %s11, 0
      %p43 = por %p41, %p42
      %p44 = scmp.ne.s32.totalorder %s33, %s36
      %p45 = scmp.eq.s32.totalorder %s16, 1
      %p46 = por %p44, %p45
      %p47 = scmp.ne.s32.totalorder %s36, %s37
      %p48 = scmp.eq.s32.totalorder %s16, 0
      %p49 = por %p47, %p48
      %p50 = scmp.ne.s32.totalorder %s36, %s37
      %p51 = scmp.eq.s32.totalorder %s17, 1
      %p52 = por %p50, %p51
      %p54 = scmp.ne.s32.totalorder %s37, %s53
      %p55 = scmp.eq.s32.totalorder %s17, 0
      %p56 = por %p54, %p55
      %s57 = ssub.s32 %s18, %s30
      %p58 = scmp.eq.s32.totalorder %s57, 0
      %s60 = sadd.s32 %s59, 1
      %s61 = scalar_select %p58, %s59, %s60
      %p64 = pneg %p58
      %p65 = scmp.eq.s32.totalorder %s11, 1
      %p66 = por %p64, %p65
      %p67 = scmp.ne.s32.totalorder %s59, %s62
      %p68 = scmp.eq.s32.totalorder %s11, 0
      %p69 = por %p67, %p68
      %p70 = scmp.ne.s32.totalorder %s59, %s62
      %p71 = scmp.eq.s32.totalorder %s16, 1
      %p72 = por %p70, %p71
      %p73 = scmp.ne.s32.totalorder %s62, %s63
      %p74 = scmp.eq.s32.totalorder %s16, 0
      %p75 = por %p73, %p74
      %p76 = scmp.ne.s32.totalorder %s62, %s63
      %p77 = scmp.eq.s32.totalorder %s17, 1
      %p78 = por %p76, %p77
      %p80 = scmp.ne.s32.totalorder %s63, %s79
      %p81 = scmp.eq.s32.totalorder %s17, 0
      %p82 = por %p80, %p81
      %s83 = ssub.s32 %s19, %s26
      %s84 = ssub.s32 %s18, %s30
      %s85 = sor.u32 %s83, %s84
      %p86 = scmp.eq.s32.totalorder %s85, 0
      %s88 = sadd.s32 %s87, 1
      %s89 = scalar_select %p86, %s87, %s88
      %p92 = pneg %p86
      %p93 = scmp.eq.s32.totalorder %s11, 1
      %p94 = por %p92, %p93
      %p95 = scmp.ne.s32.totalorder %s87, %s90
      %p96 = scmp.eq.s32.totalorder %s11, 0
      %p97 = por %p95, %p96
      %p98 = scmp.ne.s32.totalorder %s87, %s90
      %p99 = scmp.eq.s32.totalorder %s16, 1
      %p100 = por %p98, %p99
      %p101 = scmp.ne.s32.totalorder %s90, %s91
      %p102 = scmp.eq.s32.totalorder %s16, 0
      %p103 = por %p101, %p102
      %p104 = scmp.ne.s32.totalorder %s90, %s91
      %p105 = scmp.eq.s32.totalorder %s17, 1
      %p106 = por %p104, %p105
      %p108 = scmp.ne.s32.totalorder %s91, %s107
      %p109 = scmp.eq.s32.totalorder %s17, 0
      %p110 = por %p108, %p109
      %p111 = scmp.le.s32.totalorder 1, %s11
      %p112 = scmp.lt.s32.totalorder %s11, 3
      %p113 = pnand %p111, %p112
      %p114 = pneg %p113
      // Predicated region
      $region9: #{modality_projector_forward.1} parent=5 // pred_check
        _
      $region10: #{modality_projector_forward.1} parent=5 // pred_check_branch
        %116 = sbr.rel (%p113) target = $region12
      $region11: #{modality_projector_forward.1} parent=5 // pred_region
        %s117 = ssub.s32 %s11, 1
        // Predicated region
        $region13: #{modality_projector_forward.1} parent=11 // pred_check
          %p118 = pneg %p75
        $region14: #{modality_projector_forward.1} parent=11 // pred_check_branch
          %120 = sbr.rel (%p118) target = $region16
        $region15: #{modality_projector_forward.1} parent=11 // pred_region
          %p121 = scmp.lt.s32.totalorder %s20, 0
          %s122 = scalar_select %p121, %s20, 0
          %s123 = smul.addr %s122, 4
          %s124 = scalar_lea.vmem %s1, %s123
        $region16: #{modality_projector_forward.1} parent=11 // pred_fallthru
          _
      $region12: #{modality_projector_forward.1} parent=5 // pred_fallthru
        _
      %p125 = scmp.lt.s32.totalorder %s11, 2
      // Predicated region
      $region17: #{modality_projector_forward.1} parent=5 // pred_check
        %p126 = pneg %p125
      $region18: #{modality_projector_forward.1} parent=5 // pred_check_branch
        %128 = sbr.rel (%p126) target = $region20
      $region19: #{modality_projector_forward.1} parent=5 // pred_region
        // Predicated region
        $region21: #{modality_projector_forward.1} parent=19 // pred_check
          %p129 = pneg %p43
        $region22: #{modality_projector_forward.1} parent=19 // pred_check_branch
          %131 = sbr.rel (%p129) target = $region24
        $region23: #{modality_projector_forward.1} parent=19 // pred_region
          %s132 = smul.u32 4, %s19
          %p133 = scmp.lt.s32.totalorder %s132, 7
          %s134 = scalar_select %p133, %s132, 7
          %s135 = smul.addr %s134, 2
          %s136 = smul.addr %s135, 4
          %s137 = scalar_lea.vmem %s0, %s136
          %s138 = smul.u32 4, %s19
        $region24: #{modality_projector_forward.1} parent=19 // pred_fallthru
          _
      $region20: #{modality_projector_forward.1} parent=5 // pred_fallthru
        _
      %p139 = scmp.le.s32.totalorder 1, %s11
      %p140 = scmp.lt.s32.totalorder %s11, 3
      %p141 = pnand %p139, %p140
      %p142 = pneg %p141
      // Predicated region
      $region25: #{modality_projector_forward.1} parent=5 // pred_check
        _
      $region26: #{modality_projector_forward.1} parent=5 // pred_check_branch
        %144 = sbr.rel (%p141) target = $region28
      $region27: #{modality_projector_forward.1} parent=5 // pred_region
        %s145 = ssub.s32 %s11, 1
        %s146 = smul.u32 4, %s21
        %p147 = scmp.lt.s32.totalorder %s146, 7
        %s148 = scalar_select %p147, %s146, 7
        %s149 = smul.addr %s148, 2
        %s150 = smul.addr %s149, 4
        %s151 = scalar_lea.vmem %s0, %s150
        %p152 = pneg %p49
        %p153 = pneg %p46
        %p154 = scmp.lt.s32.totalorder %s20, 0
        %s155 = scalar_select %p154, %s20, 0
        %s156 = smul.addr %s155, 4
        %s157 = scalar_lea.vmem %s1, %s156
        %p158 = pneg %p75
        %p159 = pneg %p72
        %p160 = pneg %p103
        %p161 = pneg %p100
        %s162 = sand.u32 %s90, 1
        %s163 = scalar_lea.sflag [#allocation3], %s162
        %s164 = sand.u32 %s90, 1
        %s165 = smul.addr %s164, 8
        %s166 = scalar_lea.vmem [#allocation2], %s165
        %s167 = smul.u32 4, %s21
        %p168 = scmp.lt.s32.totalorder %s167, 7
        %s169 = scalar_select %p168, %s167, 7
        %s170 = smul.addr %s169, 2
        %s171 = smul.addr %s170, 4
        %s172 = scalar_lea.vmem %s0, %s171
        %s173 = smul.u32 4, %s21
        %p174 = scmp.lt.s32.totalorder %s20, 0
        %s175 = scalar_select %p174, %s20, 0
        %s176 = smul.addr %s175, 4
        %s177 = scalar_lea.vmem %s1, %s176
        %s178 = smul.u32 4, %s21
        %v180 = vld [vmem:[%s172] sm:$0xf]
        %v181 = vld [vmem:[%s172 + $0x8] sm:$0xf]
        %v182 = vld [vmem:[%s172 + $0x10] sm:$0xf]
        %v183 = vld [vmem:[%s172 + $0x18] sm:$0xf]
        %v188 = vcombine.low %v180, %v181
        %v189 = vcombine.low %v182, %v183
        %v192 = vpack.c.bf16 %v189, %v188
        %v193 = vld [vmem:[%s177] sm:$0xf]
        %v194 = vld [vmem:[%s177 + $0x4] sm:$0xf]
        %v195 = vld [vmem:[%s177 + $0x8] sm:$0xf]
        %v196 = vld [vmem:[%s177 + $0xc] sm:$0xf]
        %v197 = vld [vmem:[%s177 + $0x10] sm:$0xf]
        %v198 = vld [vmem:[%s177 + $0x14] sm:$0xf]
        %v199 = vld [vmem:[%s177 + $0x18] sm:$0xf]
        %v200 = vld [vmem:[%s177 + $0x1c] sm:$0xf]
        %s201 = scalar_lea.vmem %s172, 4
        %v202 = vld [vmem:[%s201] sm:$0xf]
        %v203 = vld [vmem:[%s201 + $0x8] sm:$0xf]
        %v204 = vld [vmem:[%s201 + $0x10] sm:$0xf]
        %v205 = vld [vmem:[%s201 + $0x18] sm:$0xf]
        %v210 = vcombine.low %v202, %v203
        %v211 = vcombine.low %v204, %v205
        %v214 = vpack.c.bf16 %v211, %v210
        %s215 = scalar_lea.vmem %s177, 32
        %v216 = vld [vmem:[%s215] sm:$0xf]
        %v217 = vld [vmem:[%s215 + $0x4] sm:$0xf]
        %v218 = vld [vmem:[%s215 + $0x8] sm:$0xf]
        %v219 = vld [vmem:[%s215 + $0xc] sm:$0xf]
        %v220 = vld [vmem:[%s215 + $0x10] sm:$0xf]
        %v221 = vld [vmem:[%s215 + $0x14] sm:$0xf]
        %v222 = vld [vmem:[%s215 + $0x18] sm:$0xf]
        %v223 = vld [vmem:[%s215 + $0x1c] sm:$0xf]
        %v232 = vunpack.c.l.b16 %v216
        %v233 = vunpack.c.l.b16 %v217
        %v234 = vunpack.c.l.b16 %v218
        %v235 = vunpack.c.l.b16 %v219
        %v236 = vunpack.c.l.b16 %v220
        %v237 = vunpack.c.l.b16 %v221
        %v238 = vunpack.c.l.b16 %v222
        %v239 = vunpack.c.l.b16 %v223
        %v240 = vpack.c.b16 %v233, %v232
        %v241 = vpack.c.b16 %v235, %v234
        %v242 = vpack.c.b16 %v237, %v236
        %v243 = vpack.c.b16 %v239, %v238
        %vm248 = vcmask 523264
        %v250 = vsel %vm248, %v214, 0
        %252 = vmatprep.subr.bf16.mxu0 0
        %253 = vmatpush1.bf16.msra.mxu0 %v240
        %254 = vmatprep.subr.bf16.mxu0 0
        %255 = vmatpush1.bf16.msra.mxu0 %v241
        %256 = vmatprep.subr.bf16.mxu0 0
        %257 = vmatpush1.bf16.msra.mxu0 %v242
        %258 = vmatprep.subr.bf16.mxu0 0
        %259 = vmatpush1.bf16.msra.mxu0 %v243
        %260 = vmatprep.subr.bf16.mxu0 0
        %261 = vmatpush1.bf16.msra.mxu0 0
        %262 = vmatprep.subr.bf16.mxu0 0
        %263 = vmatpush1.bf16.msra.mxu0 0
        %264 = vmatprep.subr.bf16.mxu0 0
        %265 = vmatpush1.bf16.msra.mxu0 0
        %266 = vmatprep.subr.bf16.mxu0 0
        %267 = vmatpush1.bf16.msra.mxu0 0
        %268 = vmatprep.subr.bf16.mxu0 0
        %269 = vmatpush1.bf16.msra.mxu0 0
        %270 = vmatprep.subr.bf16.mxu0 0
        %271 = vmatpush1.bf16.msra.mxu0 0
        %272 = vmatprep.subr.bf16.mxu0 0
        %273 = vmatpush1.bf16.msra.mxu0 0
        %274 = vmatprep.subr.bf16.mxu0 0
        %275 = vmatpush1.bf16.msra.mxu0 0
        %276 = vmatprep.subr.bf16.mxu0 0
        %277 = vmatpush1.bf16.msra.mxu0 0
        %278 = vmatprep.subr.bf16.mxu0 0
        %279 = vmatpush1.bf16.msra.mxu0 0
        %280 = vmatprep.subr.bf16.mxu0 0
        %281 = vmatpush1.bf16.msra.mxu0 0
        %282 = vmatprep.subr.bf16.mxu0 0
        %283 = vmatpush1.bf16.msra.mxu0 0
        %284 = vmatprep.mubr.bf16.mxu0 0
        %285 = vmatmul.mubr.bf16.gmra.mrb[0].mxu0 %v250
        %v286 = vpop.f32.mrb[0].mxu0
        %v287 = vadd.f32 0.0, %v286
        %v288 = vpop.f32.mrb[0].mxu0
        %v289 = vpop.f32.mrb[0].mxu0
        %v290 = vadd.f32 0.0, %v289
        %v291 = vpop.f32.mrb[0].mxu0
        %292 = vdwg.mxu0
        %v301 = vunpack.c.l.b16 %v193
        %v302 = vunpack.c.l.b16 %v194
        %v303 = vunpack.c.l.b16 %v195
        %v304 = vunpack.c.l.b16 %v196
        %v305 = vunpack.c.l.b16 %v197
        %v306 = vunpack.c.l.b16 %v198
        %v307 = vunpack.c.l.b16 %v199
        %v308 = vunpack.c.l.b16 %v200
        %v309 = vpack.c.b16 %v302, %v301
        %v310 = vpack.c.b16 %v304, %v303
        %v311 = vpack.c.b16 %v306, %v305
        %v312 = vpack.c.b16 %v308, %v307
        %v318 = vsel %vm248, %v192, 0
        %320 = vmatprep.subr.bf16.mxu0 0
        %321 = vmatpush1.bf16.msra.mxu0 %v309
        %322 = vmatprep.subr.bf16.mxu0 0
        %323 = vmatpush1.bf16.msra.mxu0 %v310
        %324 = vmatprep.subr.bf16.mxu0 0
        %325 = vmatpush1.bf16.msra.mxu0 %v311
        %326 = vmatprep.subr.bf16.mxu0 0
        %327 = vmatpush1.bf16.msra.mxu0 %v312
        %328 = vmatprep.subr.bf16.mxu0 0
        %329 = vmatpush1.bf16.msra.mxu0 0
        %330 = vmatprep.subr.bf16.mxu0 0
        %331 = vmatpush1.bf16.msra.mxu0 0
        %332 = vmatprep.subr.bf16.mxu0 0
        %333 = vmatpush1.bf16.msra.mxu0 0
        %334 = vmatprep.subr.bf16.mxu0 0
        %335 = vmatpush1.bf16.msra.mxu0 0
        %336 = vmatprep.subr.bf16.mxu0 0
        %337 = vmatpush1.bf16.msra.mxu0 0
        %338 = vmatprep.subr.bf16.mxu0 0
        %339 = vmatpush1.bf16.msra.mxu0 0
        %340 = vmatprep.subr.bf16.mxu0 0
        %341 = vmatpush1.bf16.msra.mxu0 0
        %342 = vmatprep.subr.bf16.mxu0 0
        %343 = vmatpush1.bf16.msra.mxu0 0
        %344 = vmatprep.subr.bf16.mxu0 0
        %345 = vmatpush1.bf16.msra.mxu0 0
        %346 = vmatprep.subr.bf16.mxu0 0
        %347 = vmatpush1.bf16.msra.mxu0 0
        %348 = vmatprep.subr.bf16.mxu0 0
        %349 = vmatpush1.bf16.msra.mxu0 0
        %350 = vmatprep.subr.bf16.mxu0 0
        %351 = vmatpush1.bf16.msra.mxu0 0
        %352 = vmatprep.mubr.bf16.mxu0 0
        %353 = vmatmul.mubr.bf16.gmra.mrb[0].mxu0 %v318
        %v354 = vpop.f32.mrb[0].mxu0
        %v355 = vadd.f32 %v287, %v354
        %v356 = vpop.f32.mrb[0].mxu0
        %v357 = vpop.f32.mrb[0].mxu0
        %v358 = vadd.f32 %v290, %v357
        %v359 = vpop.f32.mrb[0].mxu0
        %360 = vdwg.mxu0
        %v363 = vcombine.high %v355, %v355
        %v364 = vcombine.high %v358, %v358
        %v367 = vpack.c.bf16 %v355, %v355
        %v368 = vpack.c.bf16 %v363, %v363
        %v369 = vpack.c.bf16 %v358, %v358
        %v370 = vpack.c.bf16 %v364, %v364
        %371 = vst [vmem:[%s166] sm:$0x3] %v367
        %372 = vst [vmem:[%s166 + $0x2] sm:$0x3] %v368
        %373 = vst [vmem:[%s166 + $0x4] sm:$0x3] %v369
        %374 = vst [vmem:[%s166 + $0x6] sm:$0x3] %v370
        %s375 = sand.u32 %s90, 1
        %s376 = scalar_lea.sflag [#allocation3], %s375
        %s377 = sand.u32 %s90, 1
        %s378 = smul.addr %s377, 8
        %s379 = scalar_lea.vmem [#allocation2], %s378
        // Predicated region
        $region29: #{modality_projector_forward.1} parent=27 // pred_check
          %p380 = pneg %p100
        $region30: #{modality_projector_forward.1} parent=27 // pred_check_branch
          %382 = sbr.rel (%p380) target = $region32
        $region31: #{modality_projector_forward.1} parent=27 // pred_region
          %s383 = smul.u32 4, %s21
          %s385 = ssub.s32 128, 128
          %386 = vsyncadd %s376, %s385
          %s387 = sadd.s32 %s20, %s383
          %s388 = smul.addr %s387, 32
          %s389 = scalar_lea.hbm %s2, %s388
          %s390 = sshll.u32 %s379, 4
          %s391 = int_to_ptr.vmem [resolvable:$true] %s390
          %396 = dma.vmem_to_hbm [thread:$0]  %s391, 128, %s389, %s376, 32, 32, 2
        $region32: #{modality_projector_forward.1} parent=27 // pred_fallthru
          _
      $region28: #{modality_projector_forward.1} parent=5 // pred_fallthru
        _
      %p397 = scmp.le.s32.totalorder 2, %s11
      // Predicated region
      $region33: #{modality_projector_forward.1} parent=5 // pred_check
        %p398 = pneg %p397
      $region34: #{modality_projector_forward.1} parent=5 // pred_check_branch
        %400 = sbr.rel (%p398) target = $region36
      $region35: #{modality_projector_forward.1} parent=5 // pred_region
        %s401 = ssub.s32 %s11, 2
        // Predicated region
        $region37: #{modality_projector_forward.1} parent=35 // pred_check
          %p402 = pneg %p106
        $region38: #{modality_projector_forward.1} parent=35 // pred_check_branch
          %404 = sbr.rel (%p402) target = $region40
        $region39: #{modality_projector_forward.1} parent=35 // pred_region
          %s405 = sand.u32 %s91, 1
          %s406 = scalar_lea.sflag [#allocation3], %s405
          %s407 = sand.u32 %s91, 1
          %s408 = smul.addr %s407, 8
          %s409 = scalar_lea.vmem [#allocation2], %s408
          %410 = dma.done %s406, 128
        $region40: #{modality_projector_forward.1} parent=35 // pred_fallthru
          _
      $region36: #{modality_projector_forward.1} parent=5 // pred_fallthru
        _
    $region6: #{modality_projector_forward.1} parent=1 // loop_footer
      %s15 = sadd.s32 1, %s11
    $region7: #{modality_projector_forward.1} parent=1 // loop_footer_branch
      %10 = sbr.rel target = $region3
    $region8: #{modality_projector_forward.1} parent=1 // loop_exit
      _
    %411 = vsyncpa [#allocation3], 1
    %s412 = scalar_lea.sflag [#allocation3], 1
    %413 = vsyncpa %s412, 1

</llo_original>
